<compile_context>
chip_gen: v7x
topology: tpu7x:2x2x1
jax: 0.10.0
libtpu: 0.0.40
codegen_flags: <defaults>
</compile_context>

<pallas_src>
import numpy as np
import jax
import jax.numpy as jnp
from jax.experimental import pallas as pl
from jax.experimental.pallas import tpu as pltpu


_LANE = 128
_SUBLANE = 8
_MIN_GRID_STEPS = 8  # target pipeline depth / 2-TC sharding granularity


def _round_up(v, m):
    return ((v + m - 1) // m) * m


def _round_down(v, m):
    return (v // m) * m


def _vmem_budget_bytes():
    """Per-generation budget for double-buffered (tb, D) f32 blocks."""
    kind = ""
    try:
        kind = jax.devices()[0].device_kind.lower()
    except Exception:
        pass
    if "v7" in kind:
        return 20 * 1024 * 1024   # v7x: 32 MiB scoped default, 64 MiB physical
    if "v5" in kind:
        return 8 * 1024 * 1024    # v5e: 16 MiB scoped default -> keep headroom
    return 12 * 1024 * 1024       # v6e / unknown: 32 MiB scoped default


def _tanh_gate_kernel(x_ref, alpha_ref, beta_ref, y_ref, dlogp_ref):
    """Elementwise gated-tanh + log-diagonal-jacobian.

    x_ref:     (TB, D)  input tile
    alpha_ref: (1, D)   exp(log_alpha)    (broadcasts over rows)
    beta_ref:  (1, D)   sigmoid(log_beta)
    y_ref:     (TB, D)  transformed output
    dlogp_ref: (TB, D)  log of diagonal jacobian
    """
    x = x_ref[...]
    alpha = alpha_ref[...]
    beta = beta_ref[...]

    one_minus_beta = 1.0 - beta
    gamma = one_minus_beta * alpha              # hoisted: (1-beta)*alpha

    t = jnp.tanh(alpha * x)
    y_ref[...] = beta * x + one_minus_beta * t
    dlogp_ref[...] = jnp.log(beta + gamma * (1.0 - t * t))


def _choose_batch_tile(B, D, budget_bytes):
    """Pick a batch tile: VMEM-bounded, >= ~8 grid steps, even step count."""
    # Three (tb, D) f32 blocks (x, y, dlogp), double-buffered -> 24 B per elem.
    bytes_per_row = 24 * D
    tb_cap = max(_SUBLANE, _round_down(budget_bytes // bytes_per_row, _SUBLANE))
    # Keep the grid several steps deep so DMA/compute pipeline and both v7x
    # TensorCores get work (instead of collapsing to grid=(1,)).
    tb_steps = max(_SUBLANE, _round_down(pl.cdiv(B, _MIN_GRID_STEPS), _SUBLANE))
    tb = max(_SUBLANE, min(tb_cap, tb_steps, _round_up(B, _SUBLANE)))

    steps = pl.cdiv(B, tb)
    if steps > 1 and steps % 2 == 1:
        # Best effort: even step count balances v7x's two TensorCores.
        tb_even = _round_down(pl.cdiv(B, steps + 1), _SUBLANE)
        if tb_even >= _SUBLANE and pl.cdiv(B, tb_even) % 2 == 0:
            tb = tb_even
    return tb


def _run_native(x, alpha, beta):
    """Gridded elementwise kernel on a 2-D (B, D) layout, resident params."""
    B, D = x.shape
    dtype = x.dtype
    tb = _choose_batch_tile(B, D, _vmem_budget_bytes())
    grid = (pl.cdiv(B, tb),)
    cost = pl.CostEstimate(
        flops=7 * B * D,
        transcendentals=2 * B * D,
        bytes_accessed=3 * B * D * 4 + 2 * D * 4,
    )
    return pl.pallas_call(
        _tanh_gate_kernel,
        out_shape=(
            jax.ShapeDtypeStruct((B, D), dtype),
            jax.ShapeDtypeStruct((B, D), dtype),
        ),
        grid=grid,
        in_specs=[
            pl.BlockSpec((tb, D), lambda i: (i, 0)),
            pl.BlockSpec((1, D), lambda i: (0, 0)),   # resident params
            pl.BlockSpec((1, D), lambda i: (0, 0)),
        ],
        out_specs=(
            pl.BlockSpec((tb, D), lambda i: (i, 0)),
            pl.BlockSpec((tb, D), lambda i: (i, 0)),
        ),
        compiler_params=pltpu.CompilerParams(dimension_semantics=("parallel",)),
        cost_estimate=cost,
    )(x, alpha, beta)


def _tanh_gate_pallas(x, alpha, beta):
    """Run the elementwise kernel, returning (y, dlogp), both shaped like x."""
    B, D = x.shape

    # Lane-dense path: D divides the lane width and the problem is big enough.
    # View (B, D) as (rows, 128) -- a free row-major reshape -- and keep tiny
    # tiled (1, 128) params resident; every store is a full-width vst.
    if (D % _LANE != 0 and _LANE % D == 0
            and B * D >= _SUBLANE * _LANE * _MIN_GRID_STEPS):
        reps = _LANE // D
        B_pad = _round_up(B, reps)
        x_in = x if B_pad == B else jnp.pad(x, ((0, B_pad - B), (0, 0)))
        rows = (B_pad * D) // _LANE
        x2 = x_in.reshape(rows, _LANE)
        a2 = jnp.tile(alpha, (1, reps))          # (1, 128), tiny
        b2 = jnp.tile(beta, (1, reps))
        y2, d2 = _run_native(x2, a2, b2)
        y = y2.reshape(B_pad, D)
        dlogp = d2.reshape(B_pad, D)
        if B_pad != B:
            y, dlogp = y[:B], dlogp[:B]
        return y, dlogp

    # General path: block over batch rows with the full feature width D
    # (block last dim == full array dim is always legal; partial last batch
    # blocks are masked by Pallas).  Only tiny batches (< 8 rows) get padded.
    B_pad = B if B >= _SUBLANE else _SUBLANE
    x_in = x if B_pad == B else jnp.pad(x, ((0, B_pad - B), (0, 0)))
    y, dlogp = _run_native(x_in, alpha, beta)
    if B_pad != B:
        y, dlogp = y[:B], dlogp[:B]
    return y, dlogp


def nonlinear_block_transformation(x, accum_blocks, log_alpha, log_beta):
    """JAX wrapper matching _NonlinearBlockTransformation.forward.

    x:            (B, dim*b)       float32
    accum_blocks: (B, dim, A, b)   float32
    log_alpha:    (1, dim*b)       float32
    log_beta:     (1, dim*b)       float32
    returns (y (B, dim*b), accum_out (B, dim, A, b))
    """
    B, D = x.shape
    Bd, dim, A, b = accum_blocks.shape
    assert Bd == B and dim * b == D

    # Parameter nonlinearities are tiny ((1, D)); precompute once outside.
    alpha = jnp.exp(log_alpha)
    beta = jax.nn.sigmoid(log_beta)

    y, dlogp = _tanh_gate_pallas(x, alpha, beta)

    # Broadcast-add over the A axis in native layout; XLA fuses this, so no
    # transposes and no extra materialized copy of the largest tensor.
    # (Fusing it into the kernel would force non-lane-dense accum blocks for
    # typical b=8/32, which costs more than the extra dlogp read it saves.)
    accum_out = accum_blocks + dlogp.reshape(B, dim, 1, b)
    return y, accum_out


def _reference(x, accum_blocks, log_alpha, log_beta):
    """Pure-JAX reference mirroring the PyTorch module."""
    alpha = jnp.exp(log_alpha)
    beta = jax.nn.sigmoid(log_beta)
    t = jnp.tanh(alpha * x)
    y = beta * x + (1.0 - beta) * t
    dlogp = jnp.log(beta + (1.0 - beta) * alpha * (1.0 - t ** 2))
    B = x.shape[0]
    dim, b = accum_blocks.shape[1], accum_blocks.shape[3]
    return y, accum_blocks + dlogp.reshape(B, dim, 1, b)


def _run_case(key, dim, b, A, B, alpha_init):
    D = dim * b
    kx, ka = jax.random.split(key)
    x = jax.random.normal(kx, (B, D), dtype=jnp.float32)
    accum_blocks = jax.random.normal(ka, (B, dim, A, b), dtype=jnp.float32)
    log_alpha = jnp.zeros((1, D), dtype=jnp.float32) + np.log(alpha_init)
    log_beta = jnp.zeros((1, D), dtype=jnp.float32)

    y, accum_out = jax.jit(nonlinear_block_transformation)(
        x, accum_blocks, log_alpha, log_beta
    )
    jax.block_until_ready((y, accum_out))

    y_ref, acc_ref = _reference(x, accum_blocks, log_alpha, log_beta)
    assert np.allclose(np.asarray(y), np.asarray(y_ref), atol=1e-4, rtol=1e-4)
    assert np.allclose(np.asarray(accum_out), np.asarray(acc_ref), atol=1e-4, rtol=1e-4)


if __name__ == "__main__":
    key = jax.random.PRNGKey(0)
    k1, k2, k3 = jax.random.split(key, 3)

    # Small shape consistent with the module (dim=4, b=8 -> D=32, batch=2, A=3):
    # exercises the general full-D path with the batch padded to 8 rows.
    _run_case(k1, dim=4, b=8, A=3, B=2, alpha_init=1.5)

    # dim=4, b=32 -> D=128, batch=16, A=2: native lane-aligned path, 2 grid steps.
    _run_case(k2, dim=4, b=32, A=2, B=16, alpha_init=1.0)

    # dim=4, b=8 -> D=32, batch=258, A=2: lane-dense flattened path with a
    # padded batch and a partial last grid block.
    _run_case(k3, dim=4, b=8, A=2, B=258, alpha_init=0.8)

    print("KERNEL_OK")
</pallas_src>

<mosaic_0001>
module attributes {stable_mosaic.version = 11 : i64} {
  func.func @_tanh_gate_kernel(%arg0: i32, %arg1: memref<8x32xf32, #tpu.memory_space<vmem>>, %arg2: memref<1x32xf32, #tpu.memory_space<vmem>>, %arg3: memref<1x32xf32, #tpu.memory_space<vmem>>, %arg4: memref<8x32xf32, #tpu.memory_space<vmem>>, %arg5: memref<8x32xf32, #tpu.memory_space<vmem>>) attributes {dimension_semantics = [#tpu.dimension_semantics<parallel>], iteration_bounds = array<i64: 1>, scalar_prefetch = 0 : i64, scratch_operands = 0 : i64, tpu.core_type = #tpu.core_type<tc>, window_params = [{transform_indices = @transform_0, window_bounds = array<i64: 8, 32>}, {pipeline_mode = #tpu.pipeline_mode<synchronous>, transform_indices = @transform_1, window_bounds = array<i64: 1, 32>}, {pipeline_mode = #tpu.pipeline_mode<synchronous>, transform_indices = @transform_2, window_bounds = array<i64: 1, 32>}, {transform_indices = @transform_3, window_bounds = array<i64: 8, 32>}, {transform_indices = @transform_4, window_bounds = array<i64: 8, 32>}]} {
    %c0 = arith.constant 0 : index
    %c0_0 = arith.constant 0 : index
    %0 = vector.load %arg1[%c0, %c0_0] : memref<8x32xf32, #tpu.memory_space<vmem>>, vector<8x32xf32>
    %c0_1 = arith.constant 0 : index
    %c0_2 = arith.constant 0 : index
    %1 = vector.load %arg2[%c0_1, %c0_2] : memref<1x32xf32, #tpu.memory_space<vmem>>, vector<1x32xf32>
    %c0_3 = arith.constant 0 : index
    %c0_4 = arith.constant 0 : index
    %2 = vector.load %arg3[%c0_3, %c0_4] : memref<1x32xf32, #tpu.memory_space<vmem>>, vector<1x32xf32>
    %cst = arith.constant 1.000000e+00 : f32
    %3 = vector.broadcast %cst : f32 to vector<1x32xf32>
    %4 = arith.subf %3, %2 : vector<1x32xf32>
    %5 = arith.mulf %4, %1 : vector<1x32xf32>
    %6 = vector.broadcast %1 : vector<1x32xf32> to vector<8x32xf32>
    %7 = arith.mulf %6, %0 : vector<8x32xf32>
    %8 = math.tanh %7 : vector<8x32xf32>
    %9 = vector.broadcast %2 : vector<1x32xf32> to vector<8x32xf32>
    %10 = arith.mulf %9, %0 : vector<8x32xf32>
    %11 = vector.broadcast %4 : vector<1x32xf32> to vector<8x32xf32>
    %12 = arith.mulf %11, %8 : vector<8x32xf32>
    %13 = arith.addf %10, %12 : vector<8x32xf32>
    %c0_5 = arith.constant 0 : index
    %c0_6 = arith.constant 0 : index
    %14 = vector.load %arg4[%c0_5, %c0_6] : memref<8x32xf32, #tpu.memory_space<vmem>>, vector<8x32xf32>
    tpu.vector_store %arg4[%c0_5, %c0_6], %13 {strides = array<i32>} : memref<8x32xf32, #tpu.memory_space<vmem>>, vector<8x32xf32>,
    %15 = arith.mulf %8, %8 : vector<8x32xf32>
    %cst_7 = arith.constant 1.000000e+00 : f32
    %16 = vector.broadcast %cst_7 : f32 to vector<8x32xf32>
    %17 = arith.subf %16, %15 : vector<8x32xf32>
    %18 = vector.broadcast %5 : vector<1x32xf32> to vector<8x32xf32>
    %19 = arith.mulf %18, %17 : vector<8x32xf32>
    %20 = vector.broadcast %2 : vector<1x32xf32> to vector<8x32xf32>
    %21 = arith.addf %20, %19 : vector<8x32xf32>
    %22 = math.log %21 : vector<8x32xf32>
    %c0_8 = arith.constant 0 : index
    %c0_9 = arith.constant 0 : index
    %23 = vector.load %arg5[%c0_8, %c0_9] : memref<8x32xf32, #tpu.memory_space<vmem>>, vector<8x32xf32>
    tpu.vector_store %arg5[%c0_8, %c0_9], %22 {strides = array<i32>} : memref<8x32xf32, #tpu.memory_space<vmem>>, vector<8x32xf32>,
    return
  }
  func.func @transform_0(%arg0: i32) -> (i32, i32) {
    %c0_i32 = arith.constant 0 : i32
    %c0_i32_0 = arith.constant 0 : i32
    return %arg0, %c0_i32 : i32, i32
  }
  func.func @transform_1(%arg0: i32) -> (i32, i32) {
    %c0_i32 = arith.constant 0 : i32
    %c0_i32_0 = arith.constant 0 : i32
    %c0_i32_1 = arith.constant 0 : i32
    return %c0_i32, %c0_i32_0 : i32, i32
  }
  func.func @transform_2(%arg0: i32) -> (i32, i32) {
    %c0_i32 = arith.constant 0 : i32
    %c0_i32_0 = arith.constant 0 : i32
    %c0_i32_1 = arith.constant 0 : i32
    return %c0_i32, %c0_i32_0 : i32, i32
  }
  func.func @transform_3(%arg0: i32) -> (i32, i32) {
    %c0_i32 = arith.constant 0 : i32
    %c0_i32_0 = arith.constant 0 : i32
    return %arg0, %c0_i32 : i32, i32
  }
  func.func @transform_4(%arg0: i32) -> (i32, i32) {
    %c0_i32 = arith.constant 0 : i32
    %c0_i32_0 = arith.constant 0 : i32
    return %arg0, %c0_i32 : i32, i32
  }
}

</mosaic_0001>

<llo_original>
// kernel: nonlinear_block_transformation.1
$region0: #{nonlinear_block_transformation.1}
  #allocation0 [shape = 'u32[]', space=smem, size = 0x4, offset = 0x4, fixed_abs, tag = 'smem constant byte address 0x4 - core index']
  #allocation1 [shape = 'u32[144,128]{1,0:T(1,128)}', space=vmem, size = 0x12000, scoped, tag = 'internal scratch']
  %s0 = inlined_call_operand.vmem [shape: f32[8,32], index: 0, kind: input, shape index: {}]
  %s1 = inlined_call_operand.vmem [shape: f32[1,32], index: 1, kind: input, shape index: {}]
  %s2 = inlined_call_operand.vmem [shape: f32[1,32], index: 2, kind: input, shape index: {}]
  %s3 = inlined_call_operand.vmem [shape: f32[8,32], index: 3, kind: output, shape index: {0}]
  %s4 = inlined_call_operand.vmem [shape: f32[8,32], index: 4, kind: output, shape index: {1}]
  %5 = xla_tuple %s3, %s4
  %s6 = sld [smem:[#allocation0]]
  $region30: #{nonlinear_block_transformation.1} parent=0
    _
  %s8 = ssub.s32 1, %s6
  %s9 = scalar_select 0, %s8, %s6
  // Predicated region
  $region2: #{nonlinear_block_transformation.1} parent=0 // pred_check
    _
  $region3: #{nonlinear_block_transformation.1} parent=0 // pred_check_branch
    %11 = sbr.rel (0) target = $region5
  $region4: #{nonlinear_block_transformation.1} parent=0 // pred_region
    _
  $region5: #{nonlinear_block_transformation.1} parent=0 // pred_fallthru
    _
  // Predicated region
  $region6: #{nonlinear_block_transformation.1} parent=0 // pred_check
    _
  $region7: #{nonlinear_block_transformation.1} parent=0 // pred_check_branch
    %13 = sbr.rel (0) target = $region9
  $region8: #{nonlinear_block_transformation.1} parent=0 // pred_region
    _
  $region9: #{nonlinear_block_transformation.1} parent=0 // pred_fallthru
    _
  // Predicated region
  $region10: #{nonlinear_block_transformation.1} parent=0 // pred_check
    _
  $region11: #{nonlinear_block_transformation.1} parent=0 // pred_check_branch
    %15 = sbr.rel (0) target = $region13
  $region12: #{nonlinear_block_transformation.1} parent=0 // pred_region
    _
  $region13: #{nonlinear_block_transformation.1} parent=0 // pred_fallthru
    _
  %v16 = vld [vmem:[%s0] sm:$0xff]
  %v17 = vld [vmem:[%s1] sm:$0x1]
  %v18 = vld [vmem:[%s2] sm:$0x1]
  %v19 = vsub.f32 1.0, %v18
  %v20 = vmul.f32 %v19, %v17
  %v22 = vlaneseq
  %v23 = vshrl.u32 %v22, 7
  %v24 = vsub.s32 0, %v23
  %v25 = vrot.slane %v17, %v24
  %v27 = vmul.f32 %v25, %v16
  %v28 = vtanh.pop %v27
  %v30 = vlaneseq
  %v31 = vshrl.u32 %v30, 7
  %v32 = vsub.s32 0, %v31
  %v33 = vrot.slane %v18, %v32
  %v35 = vmul.f32 %v33, %v16
  %v37 = vlaneseq
  %v38 = vshrl.u32 %v37, 7
  %v39 = vsub.s32 0, %v38
  %v40 = vrot.slane %v19, %v39
  %v42 = vmul.f32 %v40, %v28
  %v43 = vadd.f32 %v35, %v42
  %vm44 = vcmask 261120
  %45 = vst.msk [vmem:[%s3] sm:$0xff] %vm44, %v43
  %v46 = vmul.f32 %v28, %v28
  %v47 = vsub.f32 1.0, %v46
  %v49 = vlaneseq
  %v50 = vshrl.u32 %v49, 7
  %v51 = vsub.s32 0, %v50
  %v52 = vrot.slane %v20, %v51
  %v54 = vmul.f32 %v52, %v47
  %v55 = vadd.f32 %v33, %v54
  %v56 = vlog2.pop %v55
  %v57 = vmul.f32 %v56, 0.6931472
  %58 = vst.msk [vmem:[%s4] sm:$0xff] %vm44, %v57
  // Predicated region
  $region14: #{nonlinear_block_transformation.1} parent=0 // pred_check
    _
  $region15: #{nonlinear_block_transformation.1} parent=0 // pred_check_branch
    %60 = sbr.rel (0) target = $region17
  $region16: #{nonlinear_block_transformation.1} parent=0 // pred_region
    _
  $region17: #{nonlinear_block_transformation.1} parent=0 // pred_fallthru
    _
  // Predicated region
  $region18: #{nonlinear_block_transformation.1} parent=0 // pred_check
    _
  $region19: #{nonlinear_block_transformation.1} parent=0 // pred_check_branch
    %62 = sbr.rel (0) target = $region21
  $region20: #{nonlinear_block_transformation.1} parent=0 // pred_region
    _
  $region21: #{nonlinear_block_transformation.1} parent=0 // pred_fallthru
    _
  // Predicated region
  $region22: #{nonlinear_block_transformation.1} parent=0 // pred_check
    _
  $region23: #{nonlinear_block_transformation.1} parent=0 // pred_check_branch
    %64 = sbr.rel (0) target = $region25
  $region24: #{nonlinear_block_transformation.1} parent=0 // pred_region
    _
  $region25: #{nonlinear_block_transformation.1} parent=0 // pred_fallthru
    _
  // Predicated region
  $region26: #{nonlinear_block_transformation.1} parent=0 // pred_check
    _
  $region27: #{nonlinear_block_transformation.1} parent=0 // pred_check_branch
    %66 = sbr.rel (0) target = $region29
  $region28: #{nonlinear_block_transformation.1} parent=0 // pred_region
    _
  $region29: #{nonlinear_block_transformation.1} parent=0 // pred_fallthru
    _

</llo_original>
